<compile_context>
chip_gen: v5e
topology: v5e:2x2
jax: 0.10.0
libtpu: 0.0.40
codegen_flags: <defaults>
</compile_context>

<pallas_src>
import functools

import jax
import jax.numpy as jnp
from jax.experimental import pallas as pl
from jax.experimental.pallas import tpu as pltpu

_LANE = 128
_SUBLANE = 8


def _round_up(a, b):
    return (a + b - 1) // b * b


def _pow_int_or_float(u, gamma):
    """u ** gamma: VPU multiply chain for small integer gamma, pow otherwise."""
    g = float(gamma)
    if g == int(g) and 0 <= int(g) <= 8:
        ig = int(g)
        if ig == 0:
            return jnp.ones_like(u)
        w = u
        for _ in range(ig - 1):
            w = w * u
        return w
    return u ** g


def _focal_loss_kernel(logits_ref, targets_ref, out_ref, *, gamma, alpha, n_rows, tile_n):
    # logits_ref: (TILE_N, C) in input dtype (cast to f32 here, not in the wrapper)
    # targets_ref: (TILE_N, 1) int32
    # out_ref: (8, 128) f32 — per-tile block; partial sum written at [0, 0]
    i = pl.program_id(0)

    x = logits_ref[...].astype(jnp.float32)          # (TILE_N, C)
    t = targets_ref[...]                             # (TILE_N, 1) int32

    # Numerically-stable log-sum-exp.  The logical class extent is exactly C,
    # so the max / sum reductions mask any physical lane padding themselves.
    m = jnp.max(x, axis=-1, keepdims=True)           # (TILE_N, 1)
    e = jnp.exp(x - m)                                # (TILE_N, C)
    sum_e = jnp.sum(e, axis=-1, keepdims=True)        # (TILE_N, 1)
    lse = jnp.log(sum_e) + m                           # (TILE_N, 1) = logsumexp(x)

    # Single masked reduce replaces the two one-hot gathers of the old version.
    col = jax.lax.broadcasted_iota(jnp.int32, x.shape, 1)
    true_x = jnp.sum(jnp.where(col == t, x, 0.0), axis=-1, keepdims=True)

    ce = jnp.maximum(lse - true_x, 0.0)               # cross-entropy = -log p_target (>= 0)
    pt = jnp.exp(-ce)                                  # (TILE_N, 1) EUP exp, no divide
    f = alpha * _pow_int_or_float(1.0 - pt, gamma) * ce

    # The last block may run past N (no wrapper padding): discard those rows
    # with a select (NOT a multiply) so garbage / NaN / Inf rows cannot leak.
    row = jax.lax.broadcasted_iota(jnp.int32, f.shape, 0) + i * tile_n
    f = jnp.where(row < n_rows, f, 0.0)

    partial = jnp.sum(f)

    # Partial sum at [0, 0], zeros elsewhere -> wrapper just does jnp.sum(out).
    r = jax.lax.broadcasted_iota(jnp.int32, out_ref.shape, 0)
    c = jax.lax.broadcasted_iota(jnp.int32, out_ref.shape, 1)
    out_ref[...] = jnp.where((r == 0) & (c == 0), partial, jnp.float32(0.0))


def focal_loss(inputs, targets, gamma=2.0, alpha=3.0):
    """inputs: (N, C) float logits (any float dtype); targets: (N,) int class indices."""
    n, c = inputs.shape
    itemsize = jnp.dtype(inputs.dtype).itemsize
    c_phys = _round_up(c, _LANE)  # physical lane footprint of one logits row in VMEM

    # Generation-aware VMEM budget (v5e/v6e: 128 MiB, v7x: 64 MiB per TensorCore).
    try:
        vmem_cap = pltpu.get_tpu_info().vmem_capacity_bytes
    except Exception:  # pragma: no cover - conservative fallback (v7x-sized)
        vmem_cap = 64 * 1024 * 1024
    vmem_limit = min((vmem_cap * 3) // 4, 64 * 1024 * 1024)   # 64 MiB v5e/v6e, 48 MiB v7x
    budget = vmem_limit - 4 * 1024 * 1024                     # headroom: out blocks, misc

    # Per-row VMEM bytes:
    #   2x double-buffered logits input
    # + ~4 full-tile f32 temporaries in the body (x_f32, e, iota, masked gather)
    # + 2x (tile_n, 1) int32 target blocks ((8,128)-tiled physically -> 512 B/row each)
    row_bytes = 2 * c_phys * itemsize + 4 * c_phys * 4 + 2 * 512

    tile_n = max(_SUBLANE, (budget // row_bytes) // _SUBLANE * _SUBLANE)
    tile_n = min(tile_n, 8192)  # extra safety margin for tiny-C shapes (still >> the 512-row knee)
    # Keep at least 2 tiles so the "parallel" axis can feed both v7x TensorCores.
    tile_n = min(tile_n, max(_SUBLANE, _round_up(pl.cdiv(n, 2), _SUBLANE)))

    num_tiles = pl.cdiv(n, tile_n)

    # No padding of logits or targets in HBM; only a cheap (N,) -> (N, 1) reshape.
    t = targets.astype(jnp.int32).reshape(n, 1)

    kernel = functools.partial(
        _focal_loss_kernel, gamma=gamma, alpha=alpha, n_rows=n, tile_n=tile_n
    )

    partials = pl.pallas_call(
        kernel,
        out_shape=jax.ShapeDtypeStruct((num_tiles * _SUBLANE, _LANE), jnp.float32),
        grid_spec=pltpu.PrefetchScalarGridSpec(
            num_scalar_prefetch=0,
            grid=(num_tiles,),
            in_specs=[
                # Class dim = full array extent (no 128-divisibility needed, no HBM pad).
                pl.BlockSpec((tile_n, c), lambda i: (i, 0)),
                pl.BlockSpec((tile_n, 1), lambda i: (i, 0)),
            ],
            out_specs=pl.BlockSpec((_SUBLANE, _LANE), lambda i: (i, 0)),
        ),
        compiler_params=pltpu.CompilerParams(
            dimension_semantics=("parallel",),           # both TCs on v7x
            vmem_limit_bytes=int(vmem_limit),            # per-chip, budgeted above
        ),
    )(inputs, t)

    # Every non-[0,0] entry is zero, so a plain sum replaces the strided gather.
    return jnp.sum(partials) / jnp.float32(n)


def _focal_loss_ref(inputs, targets, gamma=2.0, alpha=3.0):
    # Pure-JAX reference replicating torch.nn.functional.cross_entropy + focal term.
    logp = jax.nn.log_softmax(inputs.astype(jnp.float32), axis=-1)
    ce = -jnp.take_along_axis(logp, targets[:, None], axis=-1)[:, 0]
    pt = jnp.exp(-ce)
    return jnp.mean(alpha * (1.0 - pt) ** gamma * ce)


if __name__ == "__main__":
    key = jax.random.PRNGKey(0)
    k1, k2 = jax.random.split(key)
    # Deliberately non-multiples of 8 / 128 to exercise the OOB-tail masking and
    # the unpadded (lane-masked) class dim.
    N, C = 37, 10
    logits = jax.random.normal(k1, (N, C), dtype=jnp.float32)
    targets = jax.random.randint(k2, (N,), 0, C, dtype=jnp.int32)

    out = jax.block_until_ready(focal_loss(logits, targets, gamma=2.0, alpha=3.0))
    ref = _focal_loss_ref(logits, targets, gamma=2.0, alpha=3.0)
    assert jnp.allclose(out, ref, rtol=1e-5, atol=1e-5), (out, ref)

    # bf16 logits path: kernel reads bf16 from HBM and casts per tile (no wrapper up-cast).
    logits_bf16 = logits.astype(jnp.bfloat16)
    out_bf16 = jax.block_until_ready(focal_loss(logits_bf16, targets))
    ref_bf16 = _focal_loss_ref(logits_bf16.astype(jnp.float32), targets)
    assert jnp.allclose(out_bf16, ref_bf16, rtol=1e-4, atol=1e-4), (out_bf16, ref_bf16)

    print("KERNEL_OK")
</pallas_src>

<mosaic_0001>
module attributes {stable_mosaic.version = 11 : i64} {
  func.func @_focal_loss_kernel(%arg0: i32, %arg1: memref<24x10xf32, #tpu.memory_space<vmem>>, %arg2: memref<24x1xi32, #tpu.memory_space<vmem>>, %arg3: memref<8x128xf32, #tpu.memory_space<vmem>>) attributes {dimension_semantics = [#tpu.dimension_semantics<parallel>], iteration_bounds = array<i64: 2>, scalar_prefetch = 0 : i64, scratch_operands = 0 : i64, tpu.core_type = #tpu.core_type<tc>, window_params = [{transform_indices = @transform_0, window_bounds = array<i64: 24, 10>}, {transform_indices = @transform_1, window_bounds = array<i64: 24, 1>}, {transform_indices = @transform_2, window_bounds = array<i64: 8, 128>}]} {
    %c0 = arith.constant 0 : index
    %c0_0 = arith.constant 0 : index
    %0 = vector.load %arg1[%c0, %c0_0] : memref<24x10xf32, #tpu.memory_space<vmem>>, vector<24x10xf32>
    %c0_1 = arith.constant 0 : index
    %c0_2 = arith.constant 0 : index
    %1 = vector.load %arg2[%c0_1, %c0_2] : memref<24x1xi32, #tpu.memory_space<vmem>>, vector<24x1xi32>
    %cst = arith.constant dense<0xFF800000> : vector<24xf32>
    %2 = vector.multi_reduction <maximumf>, %0, %cst [1] : vector<24x10xf32> to vector<24xf32>
    %3 = vector.shape_cast %2 : vector<24xf32> to vector<24x1xf32>
    %4 = vector.broadcast %3 : vector<24x1xf32> to vector<24x10xf32>
    %5 = arith.subf %0, %4 : vector<24x10xf32>
    %6 = math.exp %5 : vector<24x10xf32>
    %cst_3 = arith.constant dense<0.000000e+00> : vector<24xf32>
    %7 = vector.multi_reduction <add>, %6, %cst_3 [1] : vector<24x10xf32> to vector<24xf32>
    %8 = vector.shape_cast %7 : vector<24xf32> to vector<24x1xf32>
    %9 = math.log %8 : vector<24x1xf32>
    %10 = arith.addf %9, %3 : vector<24x1xf32>
    %11 = tpu.iota {dimensions = array<i32: 1>} : vector<24x10xi32>
    %12 = vector.broadcast %1 : vector<24x1xi32> to vector<24x10xi32>
    %13 = arith.cmpi eq, %11, %12 : vector<24x10xi32>
    %cst_4 = arith.constant 0.000000e+00 : f32
    %14 = vector.broadcast %cst_4 : f32 to vector<24x10xf32>
    %15 = arith.select %13, %0, %14 : vector<24x10xi1>, vector<24x10xf32>
    %cst_5 = arith.constant dense<0.000000e+00> : vector<24xf32>
    %16 = vector.multi_reduction <add>, %15, %cst_5 [1] : vector<24x10xf32> to vector<24xf32>
    %17 = vector.shape_cast %16 : vector<24xf32> to vector<24x1xf32>
    %18 = arith.subf %10, %17 : vector<24x1xf32>
    %cst_6 = arith.constant 0.000000e+00 : f32
    %19 = vector.broadcast %cst_6 : f32 to vector<24x1xf32>
    %20 = arith.maximumf %18, %19 : vector<24x1xf32>
    %cst_7 = arith.constant 0.000000e+00 : f32
    %21 = vector.broadcast %cst_7 : f32 to vector<24x1xf32>
    %22 = arith.subf %21, %20 : vector<24x1xf32>
    %23 = math.exp %22 : vector<24x1xf32>
    %cst_8 = arith.constant 1.000000e+00 : f32
    %24 = vector.broadcast %cst_8 : f32 to vector<24x1xf32>
    %25 = arith.subf %24, %23 : vector<24x1xf32>
    %26 = arith.mulf %25, %25 : vector<24x1xf32>
    %cst_9 = arith.constant 3.000000e+00 : f32
    %27 = vector.broadcast %cst_9 : f32 to vector<24x1xf32>
    %28 = arith.mulf %27, %26 : vector<24x1xf32>
    %29 = arith.mulf %28, %20 : vector<24x1xf32>
    %30 = tpu.iota {dimensions = array<i32: 0>} : vector<24x1xi32>
    %c24_i32 = arith.constant 24 : i32
    %31 = arith.muli %arg0, %c24_i32 : i32
    %32 = vector.broadcast %31 : i32 to vector<24x1xi32>
    %33 = arith.addi %30, %32 : vector<24x1xi32>
    %c37_i32 = arith.constant 37 : i32
    %34 = vector.broadcast %c37_i32 : i32 to vector<24x1xi32>
    %35 = arith.cmpi slt, %33, %34 : vector<24x1xi32>
    %cst_10 = arith.constant 0.000000e+00 : f32
    %36 = vector.broadcast %cst_10 : f32 to vector<24x1xf32>
    %37 = arith.select %35, %29, %36 : vector<24x1xi1>, vector<24x1xf32>
    %38 = vector.shape_cast %37 : vector<24x1xf32> to vector<1x24x1xf32>
    %cst_11 = arith.constant dense<0.000000e+00> : vector<1xf32>
    %39 = vector.multi_reduction <add>, %38, %cst_11 [1, 2] : vector<1x24x1xf32> to vector<1xf32>
    %40 = vector.shape_cast %39 : vector<1xf32> to vector<1x1x1xf32>
    %41 = vector.extract %40[0, 0, 0] : f32 from vector<1x1x1xf32>
    %42 = tpu.iota {dimensions = array<i32: 0>} : vector<8x128xi32>
    %43 = tpu.iota {dimensions = array<i32: 1>} : vector<8x128xi32>
    %c0_i32 = arith.constant 0 : i32
    %44 = vector.broadcast %c0_i32 : i32 to vector<8x128xi32>
    %45 = arith.cmpi eq, %42, %44 : vector<8x128xi32>
    %c0_i32_12 = arith.constant 0 : i32
    %46 = vector.broadcast %c0_i32_12 : i32 to vector<8x128xi32>
    %47 = arith.cmpi eq, %43, %46 : vector<8x128xi32>
    %48 = arith.andi %45, %47 : vector<8x128xi1>
    %cst_13 = arith.constant 0.000000e+00 : f32
    %49 = vector.broadcast %41 : f32 to vector<8x128xf32>
    %50 = vector.broadcast %cst_13 : f32 to vector<8x128xf32>
    %51 = arith.select %48, %49, %50 : vector<8x128xi1>, vector<8x128xf32>
    %c0_14 = arith.constant 0 : index
    %c0_15 = arith.constant 0 : index
    %52 = vector.load %arg3[%c0_14, %c0_15] : memref<8x128xf32, #tpu.memory_space<vmem>>, vector<8x128xf32>
    tpu.vector_store %arg3[%c0_14, %c0_15], %51 {strides = array<i32>} : memref<8x128xf32, #tpu.memory_space<vmem>>, vector<8x128xf32>,
    return
  }
  func.func @transform_0(%arg0: i32) -> (i32, i32) {
    %c0_i32 = arith.constant 0 : i32
    %c0_i32_0 = arith.constant 0 : i32
    return %arg0, %c0_i32 : i32, i32
  }
  func.func @transform_1(%arg0: i32) -> (i32, i32) {
    %c0_i32 = arith.constant 0 : i32
    %c0_i32_0 = arith.constant 0 : i32
    return %arg0, %c0_i32 : i32, i32
  }
  func.func @transform_2(%arg0: i32) -> (i32, i32) {
    %c0_i32 = arith.constant 0 : i32
    %c0_i32_0 = arith.constant 0 : i32
    return %arg0, %c0_i32 : i32, i32
  }
}

</mosaic_0001>

<llo_original>
// kernel: tpu_custom_call.1
$region0: #{tpu_custom_call.1}
  #allocation0 [shape = 'u32[]', space=smem, size = 0x4, offset = 0x4, fixed_abs, tag = 'smem constant byte address 0x4 - core index']
  #allocation1 [shape = 'u32[72,128]{1,0:T(1,128)}', space=vmem, size = 0x9000, scoped, tag = 'internal scratch']
  %s0 = inlined_call_operand.vmem [shape: f32[37,10], index: 0, kind: input, shape index: {}]
  %s1 = inlined_call_operand.vmem [shape: s32[37,1], index: 1, kind: input, shape index: {}]
  %s2 = inlined_call_operand.hbm [shape: f32[16,128], index: 2, kind: output, shape index: {}]
  %s3 = sld [smem:[#allocation0]]
  $region41: #{tpu_custom_call.1} parent=0
    _
  %s5 = ssub.s32 1, %s3
  %s6 = scalar_select 0, %s5, %s3
  $region1: #{tpu_custom_call.1} parent=0
    #allocation2 [shape = 'u8[8192]{0}', space=vmem, size = 0x2000, scoped, tag = 'output window, operand 0']
    #allocation3 [shape = 's32[2]{0}', space=sflag, size = 0x8, scoped, tag = 'scoped memory for tpu_custom_call.1']
    %7 = vsyncpa [#allocation3], 0
    %s8 = scalar_lea.sflag [#allocation3], 1
    %9 = vsyncpa %s8, 0
    loop: start=0, step=1, limit=4
    $region2: #{tpu_custom_call.1} parent=1 // loop_pre_header
      _
    $region3: #{tpu_custom_call.1} parent=1 // loop_header
      %s11 = sphi 0, %s15
      %p12 = scmp.ge.s32.totalorder %s11, 4
      %s21 = sphi 0, %s23
      %s24 = sphi 0, %s21
      %s25 = sphi 0, %s24
      %s41 = sphi 0, %s25
      %s47 = sphi 0, %s49
      %s50 = sphi 0, %s47
      %s51 = sphi 0, %s50
      %s67 = sphi 0, %s51
      %s73 = sphi 0, %s75
      %s76 = sphi 0, %s73
      %s77 = sphi 0, %s76
      %s93 = sphi 0, %s77
    $region4: #{tpu_custom_call.1} parent=1 // loop_header_branch
      %14 = sbr.rel (%p12) target = $region8
    $region5: #{tpu_custom_call.1} parent=1 // loop_body
      %s16 = ssub.s32 %s11, 1
      %s17 = ssub.s32 %s11, 2
      %s18 = sadd.s32 %s11, 1
      %s19 = ssub.s32 %s11, %s18
      %p20 = scmp.eq.s32.totalorder %s19, 0
      %s22 = sadd.s32 %s21, 1
      %s23 = scalar_select %p20, %s21, %s22
      %p26 = pneg %p20
      %p27 = scmp.eq.s32.totalorder %s11, 1
      %p28 = por %p26, %p27
      %p29 = scmp.ne.s32.totalorder %s21, %s24
      %p30 = scmp.eq.s32.totalorder %s11, 0
      %p31 = por %p29, %p30
      %p32 = scmp.ne.s32.totalorder %s21, %s24
      %p33 = scmp.eq.s32.totalorder %s16, 1
      %p34 = por %p32, %p33
      %p35 = scmp.ne.s32.totalorder %s24, %s25
      %p36 = scmp.eq.s32.totalorder %s16, 0
      %p37 = por %p35, %p36
      %p38 = scmp.ne.s32.totalorder %s24, %s25
      %p39 = scmp.eq.s32.totalorder %s17, 1
      %p40 = por %p38, %p39
      %p42 = scmp.ne.s32.totalorder %s25, %s41
      %p43 = scmp.eq.s32.totalorder %s17, 0
      %p44 = por %p42, %p43
      %s45 = ssub.s32 %s11, %s18
      %p46 = scmp.eq.s32.totalorder %s45, 0
      %s48 = sadd.s32 %s47, 1
      %s49 = scalar_select %p46, %s47, %s48
      %p52 = pneg %p46
      %p53 = scmp.eq.s32.totalorder %s11, 1
      %p54 = por %p52, %p53
      %p55 = scmp.ne.s32.totalorder %s47, %s50
      %p56 = scmp.eq.s32.totalorder %s11, 0
      %p57 = por %p55, %p56
      %p58 = scmp.ne.s32.totalorder %s47, %s50
      %p59 = scmp.eq.s32.totalorder %s16, 1
      %p60 = por %p58, %p59
      %p61 = scmp.ne.s32.totalorder %s50, %s51
      %p62 = scmp.eq.s32.totalorder %s16, 0
      %p63 = por %p61, %p62
      %p64 = scmp.ne.s32.totalorder %s50, %s51
      %p65 = scmp.eq.s32.totalorder %s17, 1
      %p66 = por %p64, %p65
      %p68 = scmp.ne.s32.totalorder %s51, %s67
      %p69 = scmp.eq.s32.totalorder %s17, 0
      %p70 = por %p68, %p69
      %s71 = ssub.s32 %s11, %s18
      %p72 = scmp.eq.s32.totalorder %s71, 0
      %s74 = sadd.s32 %s73, 1
      %s75 = scalar_select %p72, %s73, %s74
      %p78 = pneg %p72
      %p79 = scmp.eq.s32.totalorder %s11, 1
      %p80 = por %p78, %p79
      %p81 = scmp.ne.s32.totalorder %s73, %s76
      %p82 = scmp.eq.s32.totalorder %s11, 0
      %p83 = por %p81, %p82
      %p84 = scmp.ne.s32.totalorder %s73, %s76
      %p85 = scmp.eq.s32.totalorder %s16, 1
      %p86 = por %p84, %p85
      %p87 = scmp.ne.s32.totalorder %s76, %s77
      %p88 = scmp.eq.s32.totalorder %s16, 0
      %p89 = por %p87, %p88
      %p90 = scmp.ne.s32.totalorder %s76, %s77
      %p91 = scmp.eq.s32.totalorder %s17, 1
      %p92 = por %p90, %p91
      %p94 = scmp.ne.s32.totalorder %s77, %s93
      %p95 = scmp.eq.s32.totalorder %s17, 0
      %p96 = por %p94, %p95
      %p97 = scmp.le.s32.totalorder 1, %s11
      %p98 = scmp.lt.s32.totalorder %s11, 3
      %p99 = pnand %p97, %p98
      %p100 = pneg %p99
      // Predicated region
      $region9: #{tpu_custom_call.1} parent=5 // pred_check
        _
      $region10: #{tpu_custom_call.1} parent=5 // pred_check_branch
        %102 = sbr.rel (%p99) target = $region12
      $region11: #{tpu_custom_call.1} parent=5 // pred_region
        %s103 = ssub.s32 %s11, 1
      $region12: #{tpu_custom_call.1} parent=5 // pred_fallthru
        _
      %p104 = scmp.lt.s32.totalorder %s11, 2
      // Predicated region
      $region13: #{tpu_custom_call.1} parent=5 // pred_check
        %p105 = pneg %p104
      $region14: #{tpu_custom_call.1} parent=5 // pred_check_branch
        %107 = sbr.rel (%p105) target = $region16
      $region15: #{tpu_custom_call.1} parent=5 // pred_region
        // Predicated region
        $region17: #{tpu_custom_call.1} parent=15 // pred_check
          %p108 = pneg %p31
        $region18: #{tpu_custom_call.1} parent=15 // pred_check_branch
          %110 = sbr.rel (%p108) target = $region20
        $region19: #{tpu_custom_call.1} parent=15 // pred_region
          %s111 = smul.u32 3, %s11
          %s112 = ssub.s32 5, %s111
          %p113 = scmp.lt.s32.totalorder %s112, 3
          %s114 = scalar_select %p113, %s112, 3
          %s115 = smul.u32 8, %s114
          %p116 = scmp.lt.s32.totalorder %s111, 4
          %s117 = scalar_select %p116, %s111, 4
          %s118 = smul.addr %s117, 8
          %s119 = scalar_lea.vmem %s0, %s118
          %s120 = smul.u32 3, %s11
          %s121 = ssub.s32 5, %s120
          %p122 = scmp.lt.s32.totalorder %s121, 3
          %s123 = scalar_select %p122, %s121, 3
          %s124 = smul.u32 8, %s123
        $region20: #{tpu_custom_call.1} parent=15 // pred_fallthru
          _
        // Predicated region
        $region21: #{tpu_custom_call.1} parent=15 // pred_check
          %p125 = pneg %p57
        $region22: #{tpu_custom_call.1} parent=15 // pred_check_branch
          %127 = sbr.rel (%p125) target = $region24
        $region23: #{tpu_custom_call.1} parent=15 // pred_region
          %s128 = smul.u32 3, %s11
          %s129 = ssub.s32 5, %s128
          %p130 = scmp.lt.s32.totalorder %s129, 3
          %s131 = scalar_select %p130, %s129, 3
          %s132 = smul.u32 8, %s131
          %p133 = scmp.lt.s32.totalorder %s128, 4
          %s134 = scalar_select %p133, %s128, 4
          %s135 = smul.addr %s134, 8
          %s136 = scalar_lea.vmem %s1, %s135
          %s137 = smul.u32 3, %s11
          %s138 = ssub.s32 5, %s137
          %p139 = scmp.lt.s32.totalorder %s138, 3
          %s140 = scalar_select %p139, %s138, 3
          %s141 = smul.u32 8, %s140
        $region24: #{tpu_custom_call.1} parent=15 // pred_fallthru
          _
      $region16: #{tpu_custom_call.1} parent=5 // pred_fallthru
        _
      %p142 = scmp.le.s32.totalorder 1, %s11
      %p143 = scmp.lt.s32.totalorder %s11, 3
      %p144 = pnand %p142, %p143
      %p145 = pneg %p144
      // Predicated region
      $region25: #{tpu_custom_call.1} parent=5 // pred_check
        _
      $region26: #{tpu_custom_call.1} parent=5 // pred_check_branch
        %147 = sbr.rel (%p144) target = $region28
      $region27: #{tpu_custom_call.1} parent=5 // pred_region
        %s148 = ssub.s32 %s11, 1
        %s149 = smul.u32 3, %s16
        %s150 = ssub.s32 5, %s149
        %p151 = scmp.lt.s32.totalorder %s150, 3
        %s152 = scalar_select %p151, %s150, 3
        %s153 = smul.u32 8, %s152
        %p154 = scmp.lt.s32.totalorder %s149, 4
        %s155 = scalar_select %p154, %s149, 4
        %s156 = smul.addr %s155, 8
        %s157 = scalar_lea.vmem %s0, %s156
        %p158 = pneg %p37
        %p159 = pneg %p34
        %s160 = smul.u32 3, %s16
        %s161 = ssub.s32 5, %s160
        %p162 = scmp.lt.s32.totalorder %s161, 3
        %s163 = scalar_select %p162, %s161, 3
        %s164 = smul.u32 8, %s163
        %p165 = scmp.lt.s32.totalorder %s160, 4
        %s166 = scalar_select %p165, %s160, 4
        %s167 = smul.addr %s166, 8
        %s168 = scalar_lea.vmem %s1, %s167
        %p169 = pneg %p63
        %p170 = pneg %p60
        %p171 = pneg %p89
        %p172 = pneg %p86
        %s173 = sand.u32 %s76, 1
        %s174 = scalar_lea.sflag [#allocation3], %s173
        %s175 = sand.u32 %s76, 1
        %s176 = smul.addr %s175, 8
        %s177 = scalar_lea.vmem [#allocation2], %s176
        %s178 = smul.u32 3, %s16
        %s179 = ssub.s32 5, %s178
        %p180 = scmp.lt.s32.totalorder %s179, 3
        %s181 = scalar_select %p180, %s179, 3
        %s182 = smul.u32 8, %s181
        %p183 = scmp.lt.s32.totalorder %s178, 4
        %s184 = scalar_select %p183, %s178, 4
        %s185 = smul.addr %s184, 8
        %s186 = scalar_lea.vmem %s0, %s185
        %s187 = smul.u32 3, %s16
        %s188 = ssub.s32 5, %s187
        %p189 = scmp.lt.s32.totalorder %s188, 3
        %s190 = scalar_select %p189, %s188, 3
        %s191 = smul.u32 8, %s190
        %s192 = smul.u32 3, %s16
        %s193 = ssub.s32 5, %s192
        %p194 = scmp.lt.s32.totalorder %s193, 3
        %s195 = scalar_select %p194, %s193, 3
        %s196 = smul.u32 8, %s195
        %p197 = scmp.lt.s32.totalorder %s192, 4
        %s198 = scalar_select %p197, %s192, 4
        %s199 = smul.addr %s198, 8
        %s200 = scalar_lea.vmem %s1, %s199
        %s201 = smul.u32 3, %s16
        %s202 = ssub.s32 5, %s201
        %p203 = scmp.lt.s32.totalorder %s202, 3
        %s204 = scalar_select %p203, %s202, 3
        %s205 = smul.u32 8, %s204
        %v206 = vld [vmem:[%s186] sm:$0xff]
        %v207 = vld [vmem:[%s186 + $0x8] sm:$0xff]
        %v208 = vld [vmem:[%s186 + $0x10] sm:$0xff]
        %v209 = vld [vmem:[%s200] sm:$0xff]
        %v210 = vld [vmem:[%s200 + $0x8] sm:$0xff]
        %v211 = vld [vmem:[%s200 + $0x10] sm:$0xff]
        %vm212 = vcmask 80896
        %v213 = vsel %vm212, %v206, -inf
        %214 = vmax.xlane.f32.xlu0 %v213
        %v215 = vpop.xlane.xlu0 %214
        %v216 = vsel %vm212, %v207, -inf
        %217 = vmax.xlane.f32.xlu0 %v216
        %v218 = vpop.xlane.xlu0 %217
        %v219 = vsel %vm212, %v208, -inf
        %220 = vmax.xlane.f32.xlu0 %v219
        %v221 = vpop.xlane.xlu0 %220
        %v222 = vsub.f32 %v206, %v215
        %v223 = vsub.f32 %v207, %v218
        %v224 = vsub.f32 %v208, %v221
        %v225 = vmul.f32 %v222, 1.442695
        %v226 = vpow.pop %v225
        %v227 = vmul.f32 %v223, 1.442695
        %v228 = vpow.pop %v227
        %v229 = vmul.f32 %v224, 1.442695
        %v230 = vpow.pop %v229
        %v231 = vsel %vm212, %v226, 0.0
        %232 = vadd.xlane.f32.xlu0 %v231
        %v233 = vpop.xlane.xlu0 %232
        %v234 = vsel %vm212, %v228, 0.0
        %235 = vadd.xlane.f32.xlu0 %v234
        %v236 = vpop.xlane.xlu0 %235
        %v237 = vsel %vm212, %v230, 0.0
        %238 = vadd.xlane.f32.xlu0 %v237
        %v239 = vpop.xlane.xlu0 %238
        %v240 = vlog2.pop %v233
        %v241 = vmul.f32 %v240, 0.6931472
        %v242 = vlog2.pop %v236
        %v243 = vmul.f32 %v242, 0.6931472
        %v244 = vlog2.pop %v239
        %v245 = vmul.f32 %v244, 0.6931472
        %v246 = vadd.f32 %v241, %v215
        %v247 = vadd.f32 %v243, %v218
        %v248 = vadd.f32 %v245, %v221
        %v249 = vlaneseq
        %v250 = vand.u32 %v249, 127
        %251 = vset.pattern.permute.xlu0 0
        %252 = vperm.xlu0 %251, %v209
        %v253 = vpop.permute.xlu0 %252
        %254 = vset.pattern.permute.xlu0 0
        %255 = vperm.xlu0 %254, %v210
        %v256 = vpop.permute.xlu0 %255
        %257 = vset.pattern.permute.xlu0 0
        %258 = vperm.xlu0 %257, %v211
        %v259 = vpop.permute.xlu0 %258
        %vm260 = vcmp.eq.s32.totalorder %v250, %v253
        %vm261 = vcmp.eq.s32.totalorder %v250, %v256
        %vm262 = vcmp.eq.s32.totalorder %v250, %v259
        %v263 = vsel %vm260, %v206, 0.0
        %v264 = vsel %vm261, %v207, 0.0
        %v265 = vsel %vm262, %v208, 0.0
        %v266 = vsel %vm212, %v263, 0.0
        %267 = vadd.xlane.f32.xlu0 %v266
        %v268 = vpop.xlane.xlu0 %267
        %v269 = vsel %vm212, %v264, 0.0
        %270 = vadd.xlane.f32.xlu0 %v269
        %v271 = vpop.xlane.xlu0 %270
        %v272 = vsel %vm212, %v265, 0.0
        %273 = vadd.xlane.f32.xlu0 %v272
        %v274 = vpop.xlane.xlu0 %273
        %v275 = vsub.f32 %v246, %v268
        %v276 = vsub.f32 %v247, %v271
        %v277 = vsub.f32 %v248, %v274
        %v278 = vmax.f32 %v275, 0.0
        %v279 = vmax.f32 %v276, 0.0
        %v280 = vmax.f32 %v277, 0.0
        %v281 = vsub.f32 0.0, %v278
        %v282 = vsub.f32 0.0, %v279
        %v283 = vsub.f32 0.0, %v280
        %v284 = vmul.f32 %v281, 1.442695
        %v285 = vpow.pop %v284
        %v286 = vmul.f32 %v282, 1.442695
        %v287 = vpow.pop %v286
        %v288 = vmul.f32 %v283, 1.442695
        %v289 = vpow.pop %v288
        %v290 = vsub.f32 1.0, %v285
        %v291 = vsub.f32 1.0, %v287
        %v292 = vsub.f32 1.0, %v289
        %v293 = vmul.f32 %v290, %v290
        %v294 = vmul.f32 %v291, %v291
        %v295 = vmul.f32 %v292, %v292
        %v296 = vmul.f32 %v293, 3.0
        %v297 = vmul.f32 %v294, 3.0
        %v298 = vmul.f32 %v295, 3.0
        %v299 = vmul.f32 %v296, %v278
        %v300 = vmul.f32 %v297, %v279
        %v301 = vmul.f32 %v298, %v280
        %v302 = vlaneseq
        %v303 = vshrl.u32 %v302, 7
        %v304 = vadd.s32 %v303, 8
        %v305 = vadd.s32 %v303, 16
        %s306 = smul.u32 %s16, 24
        %v307 = vstv %s306
        %v308 = vadd.s32 %v303, %v307
        %v309 = vadd.s32 %v304, %v307
        %v310 = vadd.s32 %v305, %v307
        %vm311 = vcmp.lt.s32.totalorder %v308, 37
        %vm312 = vcmp.lt.s32.totalorder %v309, 37
        %vm313 = vcmp.lt.s32.totalorder %v310, 37
        %v314 = vsel %vm311, %v299, 0.0
        %v315 = vsel %vm312, %v300, 0.0
        %v316 = vsel %vm313, %v301, 0.0
        %vm317 = vcmask 7168
        %v318 = vsel %vm317, %v314, 0.0
        %v319 = vsel %vm317, %v315, 0.0
        %v320 = vadd.f32 %v318, %v319
        %v321 = vsel %vm317, %v316, 0.0
        %v322 = vadd.f32 %v320, %v321
        %323 = vadd.xlane.f32.xlu0 %v322
        %v324 = vpop.xlane.xlu0 %323
        %v325 = vrot.slane %v324, 4
        %v326 = vadd.f32 %v324, %v325
        %v327 = vrot.slane %v326, 2
        %v328 = vadd.f32 %v326, %v327
        %v329 = vrot.slane %v328, 1
        %v330 = vadd.f32 %v328, %v329
        %s331 = vtos %v330
        %vm332 = vcmp.eq.s32.totalorder %v303, 0
        %vm333 = vcmp.eq.s32.totalorder %v250, 0
        %vm334 = vmand %vm332, %vm333
        %v335 = vstv %s331
        %v336 = vsel %vm334, %v335, 0.0
        %337 = vst [vmem:[%s177] sm:$0xff] %v336
        %s338 = sand.u32 %s76, 1
        %s339 = scalar_lea.sflag [#allocation3], %s338
        %s340 = sand.u32 %s76, 1
        %s341 = smul.addr %s340, 8
        %s342 = scalar_lea.vmem [#allocation2], %s341
        // Predicated region
        $region29: #{tpu_custom_call.1} parent=27 // pred_check
          %p343 = pneg %p86
        $region30: #{tpu_custom_call.1} parent=27 // pred_check_branch
          %345 = sbr.rel (%p343) target = $region32
        $region31: #{tpu_custom_call.1} parent=27 // pred_region
          %347 = vsyncadd %s339, 0
          %s348 = smul.addr %s16, 8
          %s349 = scalar_lea.hbm %s2, %s348
          %s351 = sshll.u32 %s342, 4
          %s352 = int_to_ptr.vmem [resolvable:$true] %s351
          %s353 = sshll.u32 %s349, 4
          %s354 = int_to_ptr.hbm [resolvable:$true] %s353
          %356 = dma.vmem_to_hbm [thread:$0]  %s352, 128, %s354, %s339
        $region32: #{tpu_custom_call.1} parent=27 // pred_fallthru
          _
      $region28: #{tpu_custom_call.1} parent=5 // pred_fallthru
        _
      %p357 = scmp.le.s32.totalorder 2, %s11
      // Predicated region
      $region33: #{tpu_custom_call.1} parent=5 // pred_check
        %p358 = pneg %p357
      $region34: #{tpu_custom_call.1} parent=5 // pred_check_branch
        %360 = sbr.rel (%p358) target = $region36
      $region35: #{tpu_custom_call.1} parent=5 // pred_region
        %s361 = ssub.s32 %s11, 2
        // Predicated region
        $region37: #{tpu_custom_call.1} parent=35 // pred_check
          %p362 = pneg %p92
        $region38: #{tpu_custom_call.1} parent=35 // pred_check_branch
          %364 = sbr.rel (%p362) target = $region40
        $region39: #{tpu_custom_call.1} parent=35 // pred_region
          %s365 = sand.u32 %s77, 1
          %s366 = scalar_lea.sflag [#allocation3], %s365
          %s367 = sand.u32 %s77, 1
          %s368 = smul.addr %s367, 8
          %s369 = scalar_lea.vmem [#allocation2], %s368
          %371 = dma.done %s366, 128
        $region40: #{tpu_custom_call.1} parent=35 // pred_fallthru
          _
      $region36: #{tpu_custom_call.1} parent=5 // pred_fallthru
        _
    $region6: #{tpu_custom_call.1} parent=1 // loop_footer
      %s15 = sadd.s32 1, %s11
    $region7: #{tpu_custom_call.1} parent=1 // loop_footer_branch
      %10 = sbr.rel target = $region3
    $region8: #{tpu_custom_call.1} parent=1 // loop_exit
      _
    %372 = vsyncpa [#allocation3], 1
    %s373 = scalar_lea.sflag [#allocation3], 1
    %374 = vsyncpa %s373, 1

</llo_original>
